<compile_context>
chip_gen: v7x
topology: tpu7x:2x2x1
jax: 0.10.0
libtpu: 0.0.40
codegen_flags: <defaults>
</compile_context>

<pallas_src>
import functools

import jax
import jax.numpy as jnp
import numpy as np
from jax.experimental import pallas as pl
from jax.experimental.pallas import tpu as pltpu


def _vmem_capacity_bytes():
    """Best-effort VMEM capacity query; conservative (v7x, 64 MiB/TC) fallback."""
    try:
        info = pltpu.get_tpu_info()
        cap = getattr(info, "vmem_capacity_bytes", None)
        if cap:
            return int(cap)
    except Exception:
        pass
    return 64 * 1024 * 1024


def _is_dual_core_chip():
    """True only for TPU generations with 2 TensorCores per device (v7x)."""
    try:
        kind = jax.devices()[0].device_kind.lower().replace(" ", "")
    except Exception:
        return False
    return ("v7" in kind) or ("tpu7" in kind)


def _label_smoothing_kernel(x_ref, t_ref, o_ref, acc_ref, *,
                            confidence, low_value, n_class, red_axis):
    """One (tile_n, C) row block; accumulates the SUM of smoothed-CE row losses.

    Uses the algebraic form (no true_dist / log_probs temps):
        row_loss = -( low*(sum_z - C*lse) + (conf - low)*(z_tgt - lse) )
    with z = x - max(x), derived from raw-x reductions:
        sum_z = sum(x) - C*m,   z_tgt = x[tgt] - m.
    """
    i = pl.program_id(red_axis)

    @pl.when(i == 0)
    def _():
        acc_ref[...] = jnp.zeros_like(acc_ref)

    x = x_ref[...]                                            # (TN, C), native dtype
    tgt = t_ref[...]                                          # (TN, 1) int32

    # ---- first pass over raw x: max, row sum, target-column gather (f32 acc) ----
    m = jnp.max(x, axis=-1, keepdims=True)                    # (TN, 1), native dtype
    sum_x = jnp.sum(x, axis=-1, keepdims=True,
                    dtype=jnp.float32)                        # (TN, 1) f32
    cols = jax.lax.broadcasted_iota(jnp.int32, (1, n_class), 1)   # (1, C), broadcast
    # NOTE: out-of-range targets select nothing (garbage-in/garbage-out);
    # PyTorch scatter_ would raise instead.
    x_tgt = jnp.sum(jnp.where(cols == tgt, x, 0),
                    axis=-1, keepdims=True, dtype=jnp.float32)    # (TN, 1) f32

    # ---- second pass: log-sum-exp (only C-wide temp; f32 accumulation) ----
    z = (x - m).astype(jnp.float32)                           # no-op cast for f32 in
    se = jnp.sum(jnp.exp(z), axis=-1, keepdims=True)          # (TN, 1) f32
    lse = jnp.log(se)                                         # (TN, 1) f32

    mf = m.astype(jnp.float32)
    sum_z = sum_x - jnp.float32(n_class) * mf
    z_tgt = x_tgt - mf

    row_loss = -(jnp.float32(low_value) * (sum_z - jnp.float32(n_class) * lse)
                 + jnp.float32(confidence - low_value) * (z_tgt - lse))

    # Vector-shaped accumulation; scalar reduce deferred to the final step.
    acc_ref[...] += row_loss

    @pl.when(i == pl.num_programs(red_axis) - 1)
    def _():
        o_ref[0, 0] = jnp.sum(acc_ref[...])   # per-split partial SUM (mean in wrapper)


class LabelSmoothingLossPallas:
    """Pallas TPU implementation of LabelSmoothingLoss.forward."""

    def __init__(self, size, padding_idx, smoothing=0.1):
        self.confidence = 1.0 - smoothing
        self.smoothing = smoothing
        self.size = size
        self.padding_idx = padding_idx  # stored but unused in forward (as in reference)

    # ---------------------------------------------------------------- pallas call
    def _call_pallas(self, x, target2d, *, num_splits, tile_n, tiles_per_split,
                     vmem_limit, semantics):
        N, C = x.shape
        kernel = functools.partial(
            _label_smoothing_kernel,
            confidence=self.confidence,
            low_value=self.smoothing / (C - 1),
            n_class=C,
            red_axis=1 if num_splits > 1 else 0,
        )
        if num_splits > 1:
            grid = (num_splits, tiles_per_split)
            row_map = lambda p, i: (p * tiles_per_split + i, 0)
            out_map = lambda p, i: (p, 0)
        else:
            grid = (tiles_per_split,)
            row_map = lambda i: (i, 0)
            out_map = lambda i: (0, 0)

        return pl.pallas_call(
            kernel,
            out_shape=jax.ShapeDtypeStruct((num_splits, 1), jnp.float32),
            grid_spec=pltpu.PrefetchScalarGridSpec(
                num_scalar_prefetch=0,
                grid=grid,
                in_specs=[
                    pl.BlockSpec((tile_n, C), row_map),
                    pl.BlockSpec((tile_n, 1), row_map),
                ],
                out_specs=pl.BlockSpec((1, 1), out_map,
                                       memory_space=pltpu.MemorySpace.SMEM),
                scratch_shapes=[pltpu.VMEM((tile_n, 1), jnp.float32)],
            ),
            compiler_params=pltpu.CompilerParams(
                dimension_semantics=semantics,
                vmem_limit_bytes=vmem_limit,
            ),
        )(x, target2d)

    # ---------------------------------------------------------------- forward
    def __call__(self, x, target, *, tile_n=None, allow_core_split=None):
        N, C = x.shape
        assert C == self.size
        in_bytes = jnp.dtype(x.dtype).itemsize
        min_sublane = 8 if in_bytes >= 4 else (16 if in_bytes == 2 else 32)
        assert N % min_sublane == 0, (
            f"N={N} must be a multiple of {min_sublane} for dtype {x.dtype}")
        # TODO(synk): pad N up to the sublane tile (with row masking) instead of asserting.

        vmem_cap = _vmem_capacity_bytes()

        # Honest per-row VMEM footprint:
        #   x block, double-buffered:                       2 * C * in_bytes
        #   C-wide compute temps (z / exp / select, as f32): 4 * C * 4
        #   lane-padded (tile_n,1) tiles (target dbuf, acc,
        #   m/sum_x/x_tgt/se/lse/row_loss f32 temps):       10 * 128 * 4
        per_row = 2 * C * in_bytes + 4 * C * 4 + 10 * 128 * 4

        core_parallel = getattr(pltpu, "CORE_PARALLEL", None)
        if allow_core_split is None:
            allow_core_split = _is_dual_core_chip()
        want_split = (allow_core_split and core_parallel is not None
                      and (N // 2) % min_sublane == 0)

        target2d = target.astype(jnp.int32).reshape(N, 1)

        def run(num_splits, semantics):
            rows_per_split = N // num_splits
            if tile_n is None:
                budget = int(0.45 * vmem_cap)                 # leave >half of VMEM free
                rows_by_budget = max(budget // per_row, 1)
                rows_by_block = max((16 << 20) // (C * in_bytes), 1)  # <=16 MiB / buffer
                tn = min(rows_by_budget, rows_by_block, 1024, rows_per_split)
            else:
                tn = int(tile_n)
            tn = max(min_sublane, (tn // min_sublane) * min_sublane)
            tn = min(tn, rows_per_split)
            while rows_per_split % tn != 0:
                tn -= min_sublane
            tiles_per_split = rows_per_split // tn

            footprint = tn * per_row
            vmem_limit = int(min(max(footprint + footprint // 2 + (2 << 20), 8 << 20),
                                 int(0.9 * vmem_cap)))

            return self._call_pallas(
                x, target2d, num_splits=num_splits, tile_n=tn,
                tiles_per_split=tiles_per_split, vmem_limit=vmem_limit,
                semantics=semantics)

        if want_split:
            try:
                partials = jax.block_until_ready(
                    run(2, (core_parallel, pltpu.ARBITRARY)))
            except Exception:
                # Conservative fallback if CORE_PARALLEL lowering is unavailable.
                partials = run(1, (pltpu.ARBITRARY,))
        else:
            partials = run(1, (pltpu.ARBITRARY,))

        # Per-split partial sums -> mean over all N rows (f32, done in wrapper).
        return jnp.sum(partials) / jnp.float32(N)


def _reference(x, target, size, smoothing):
    confidence = 1.0 - smoothing
    low = smoothing / (size - 1)
    lsm = jax.nn.log_softmax(x.astype(jnp.float32), axis=-1)
    onehot = jax.nn.one_hot(target, size, dtype=jnp.float32)
    true_dist = onehot * confidence + (1.0 - onehot) * low
    return -(true_dist * lsm).sum(-1).mean()


if __name__ == "__main__":
    # Small synthetic shapes: N = 64 token positions, n_class = 128.
    N, C = 64, 128
    padding_idx, smoothing = 0, 0.1

    key = jax.random.PRNGKey(0)
    kx, kt = jax.random.split(key)
    x = jax.random.normal(kx, (N, C), dtype=jnp.float32)
    target = jax.random.randint(kt, (N,), 0, C, dtype=jnp.int32)

    loss_mod = LabelSmoothingLossPallas(size=C, padding_idx=padding_idx,
                                        smoothing=smoothing)
    ref = jax.block_until_ready(_reference(x, target, C, smoothing))

    # 1) Auto-tiled path (roofline-capped tiles; single row tile here).
    loss_auto = jax.block_until_ready(loss_mod(x, target))
    np.testing.assert_allclose(np.asarray(loss_auto), np.asarray(ref),
                               rtol=1e-5, atol=1e-5)

    # 2) Forced small tiles: exercises multi-step accumulation over the grid.
    loss_tiled = jax.block_until_ready(loss_mod(x, target, tile_n=16))
    np.testing.assert_allclose(np.asarray(loss_tiled), np.asarray(ref),
                               rtol=1e-5, atol=1e-5)

    print("KERNEL_OK")
</pallas_src>

<mosaic_0001>
module attributes {stable_mosaic.version = 11 : i64} {
  func.func @_label_smoothing_kernel(%arg0: i32, %arg1: memref<64x128xf32, #tpu.memory_space<vmem>>, %arg2: memref<64x1xi32, #tpu.memory_space<vmem>>, %arg3: memref<1x1xf32, #tpu.memory_space<smem>>, %arg4: memref<64x1xf32, #tpu.memory_space<vmem>>) attributes {dimension_semantics = [#tpu.dimension_semantics<arbitrary>], iteration_bounds = array<i64: 1>, scalar_prefetch = 0 : i64, scratch_operands = 1 : i64, tpu.core_type = #tpu.core_type<tc>, window_params = [{transform_indices = @transform_0, window_bounds = array<i64: 64, 128>}, {transform_indices = @transform_1, window_bounds = array<i64: 64, 1>}, {transform_indices = @transform_2, window_bounds = array<i64: 1, 1>}]} {
    %c0_i32 = arith.constant 0 : i32
    %0 = arith.cmpi eq, %arg0, %c0_i32 : i32
    %1 = arith.extui %0 : i1 to i32
    %c0_i32_0 = arith.constant 0 : i32
    %2 = arith.cmpi ne, %1, %c0_i32_0 : i32
    scf.if %2 {
      %cst_19 = arith.constant 0.000000e+00 : f32
      %45 = vector.broadcast %cst_19 : f32 to vector<64x1xf32>
      %c0_20 = arith.constant 0 : index
      %c0_21 = arith.constant 0 : index
      %46 = vector.load %arg4[%c0_20, %c0_21] : memref<64x1xf32, #tpu.memory_space<vmem>>, vector<64x1xf32>
      tpu.vector_store %arg4[%c0_20, %c0_21], %45 {strides = array<i32>} : memref<64x1xf32, #tpu.memory_space<vmem>>, vector<64x1xf32>,
    } else {
    }
    %c0 = arith.constant 0 : index
    %c0_1 = arith.constant 0 : index
    %3 = vector.load %arg1[%c0, %c0_1] : memref<64x128xf32, #tpu.memory_space<vmem>>, vector<64x128xf32>
    %c0_2 = arith.constant 0 : index
    %c0_3 = arith.constant 0 : index
    %4 = vector.load %arg2[%c0_2, %c0_3] : memref<64x1xi32, #tpu.memory_space<vmem>>, vector<64x1xi32>
    %cst = arith.constant dense<0xFF800000> : vector<64xf32>
    %5 = vector.multi_reduction <maximumf>, %3, %cst [1] : vector<64x128xf32> to vector<64xf32>
    %6 = vector.shape_cast %5 : vector<64xf32> to vector<64x1xf32>
    %cst_4 = arith.constant dense<0.000000e+00> : vector<64xf32>
    %7 = vector.multi_reduction <add>, %3, %cst_4 [1] : vector<64x128xf32> to vector<64xf32>
    %8 = vector.shape_cast %7 : vector<64xf32> to vector<64x1xf32>
    %9 = tpu.iota {dimensions = array<i32: 1>} : vector<1x128xi32>
    %10 = vector.broadcast %9 : vector<1x128xi32> to vector<64x128xi32>
    %11 = vector.broadcast %4 : vector<64x1xi32> to vector<64x128xi32>
    %12 = arith.cmpi eq, %10, %11 : vector<64x128xi32>
    %c0_i32_5 = arith.constant 0 : i32
    %13 = arith.sitofp %c0_i32_5 : i32 to f32
    %14 = vector.broadcast %13 : f32 to vector<64x128xf32>
    %15 = arith.select %12, %3, %14 : vector<64x128xi1>, vector<64x128xf32>
    %cst_6 = arith.constant dense<0.000000e+00> : vector<64xf32>
    %16 = vector.multi_reduction <add>, %15, %cst_6 [1] : vector<64x128xf32> to vector<64xf32>
    %17 = vector.shape_cast %16 : vector<64xf32> to vector<64x1xf32>
    %18 = vector.broadcast %6 : vector<64x1xf32> to vector<64x128xf32>
    %19 = arith.subf %3, %18 : vector<64x128xf32>
    %20 = math.exp %19 : vector<64x128xf32>
    %cst_7 = arith.constant dense<0.000000e+00> : vector<64xf32>
    %21 = vector.multi_reduction <add>, %20, %cst_7 [1] : vector<64x128xf32> to vector<64xf32>
    %22 = vector.shape_cast %21 : vector<64xf32> to vector<64x1xf32>
    %23 = math.log %22 : vector<64x1xf32>
    %cst_8 = arith.constant 1.280000e+02 : f32
    %24 = vector.broadcast %cst_8 : f32 to vector<64x1xf32>
    %25 = arith.mulf %24, %6 : vector<64x1xf32>
    %26 = arith.subf %8, %25 : vector<64x1xf32>
    %27 = arith.subf %17, %6 : vector<64x1xf32>
    %cst_9 = arith.constant 1.280000e+02 : f32
    %28 = vector.broadcast %cst_9 : f32 to vector<64x1xf32>
    %29 = arith.mulf %28, %23 : vector<64x1xf32>
    %30 = arith.subf %26, %29 : vector<64x1xf32>
    %cst_10 = arith.constant 7.87401571E-4 : f32
    %31 = vector.broadcast %cst_10 : f32 to vector<64x1xf32>
    %32 = arith.mulf %31, %30 : vector<64x1xf32>
    %33 = arith.subf %27, %23 : vector<64x1xf32>
    %cst_11 = arith.constant 0.899212599 : f32
    %34 = vector.broadcast %cst_11 : f32 to vector<64x1xf32>
    %35 = arith.mulf %34, %33 : vector<64x1xf32>
    %36 = arith.addf %32, %35 : vector<64x1xf32>
    %cst_12 = arith.constant 0.000000e+00 : f32
    %37 = vector.broadcast %cst_12 : f32 to vector<64x1xf32>
    %38 = arith.subf %37, %36 : vector<64x1xf32>
    %c0_13 = arith.constant 0 : index
    %c0_14 = arith.constant 0 : index
    %39 = vector.load %arg4[%c0_13, %c0_14] : memref<64x1xf32, #tpu.memory_space<vmem>>, vector<64x1xf32>
    %40 = arith.addf %39, %38 : vector<64x1xf32>
    %c0_15 = arith.constant 0 : index
    %c0_16 = arith.constant 0 : index
    %41 = vector.load %arg4[%c0_15, %c0_16] : memref<64x1xf32, #tpu.memory_space<vmem>>, vector<64x1xf32>
    tpu.vector_store %arg4[%c0_15, %c0_16], %40 {strides = array<i32>} : memref<64x1xf32, #tpu.memory_space<vmem>>, vector<64x1xf32>,
    %c0_i32_17 = arith.constant 0 : i32
    %42 = arith.cmpi eq, %arg0, %c0_i32_17 : i32
    %43 = arith.extui %42 : i1 to i32
    %c0_i32_18 = arith.constant 0 : i32
    %44 = arith.cmpi ne, %43, %c0_i32_18 : i32
    scf.if %44 {
      %c0_19 = arith.constant 0 : index
      %c0_20 = arith.constant 0 : index
      %45 = vector.load %arg4[%c0_19, %c0_20] : memref<64x1xf32, #tpu.memory_space<vmem>>, vector<64x1xf32>
      %46 = vector.shape_cast %45 : vector<64x1xf32> to vector<1x64x1xf32>
      %cst_21 = arith.constant dense<0.000000e+00> : vector<1xf32>
      %47 = vector.multi_reduction <add>, %46, %cst_21 [1, 2] : vector<1x64x1xf32> to vector<1xf32>
      %48 = vector.shape_cast %47 : vector<1xf32> to vector<1x1x1xf32>
      %49 = vector.extract %48[0, 0, 0] : f32 from vector<1x1x1xf32>
      %c0_22 = arith.constant 0 : index
      %c0_23 = arith.constant 0 : index
      %50 = memref.load %arg3[%c0_22, %c0_23] : memref<1x1xf32, #tpu.memory_space<smem>>
      memref.store %49, %arg3[%c0_22, %c0_23] : memref<1x1xf32, #tpu.memory_space<smem>>
    } else {
    }
    return
  }
  func.func @transform_0(%arg0: i32) -> (i32, i32) {
    %c0_i32 = arith.constant 0 : i32
    %c0_i32_0 = arith.constant 0 : i32
    return %arg0, %c0_i32 : i32, i32
  }
  func.func @transform_1(%arg0: i32) -> (i32, i32) {
    %c0_i32 = arith.constant 0 : i32
    %c0_i32_0 = arith.constant 0 : i32
    return %arg0, %c0_i32 : i32, i32
  }
  func.func @transform_2(%arg0: i32) -> (i32, i32) {
    %c0_i32 = arith.constant 0 : i32
    %c0_i32_0 = arith.constant 0 : i32
    %c0_i32_1 = arith.constant 0 : i32
    return %c0_i32, %c0_i32_0 : i32, i32
  }
}

</mosaic_0001>

<llo_original>
// kernel: tpu_custom_call.1
$region0: #{tpu_custom_call.1}
  #allocation0 [shape = 'u32[]', space=smem, size = 0x4, offset = 0x4, fixed_abs, tag = 'smem constant byte address 0x4 - core index']
  #allocation1 [shape = 'u32[144,128]{1,0:T(1,128)}', space=vmem, size = 0x12000, scoped, tag = 'internal scratch']
  #allocation2 [shape = 'f32[64,1]{1,0:T(8,128)}', space=vmem, size = 0x8000, scoped, tag = 'scratch operand']
  %s0 = inlined_call_operand.vmem [shape: f32[64,128], index: 0, kind: input, shape index: {}]
  %s1 = inlined_call_operand.vmem [shape: s32[64,1], index: 1, kind: input, shape index: {}]
  %s2 = inlined_call_operand.hbm [shape: f32[1,1], index: 2, kind: output, shape index: {}]
  %s3 = sld [smem:[#allocation0]]
  $region26: #{tpu_custom_call.1} parent=0
    _
  %s5 = ssub.s32 1, %s3
  %s6 = scalar_select 0, %s5, %s3
  $region1: #{tpu_custom_call.1} parent=0
    #allocation3 [shape = 'u8[512]{0}', space=smem, size = 0x200, scoped, tag = 'output window, operand 0, single buffered']
    #allocation4 [shape = 's32[1]{0}', space=sflag, size = 0x4, scoped, tag = 'scoped memory for tpu_custom_call.1']
    %7 = vsyncpa [#allocation4], 0
    // Predicated region
    $region2: #{tpu_custom_call.1} parent=1 // pred_check
      _
    $region3: #{tpu_custom_call.1} parent=1 // pred_check_branch
      %9 = sbr.rel (0) target = $region5
    $region4: #{tpu_custom_call.1} parent=1 // pred_region
      _
    $region5: #{tpu_custom_call.1} parent=1 // pred_fallthru
      _
    // Predicated region
    $region6: #{tpu_custom_call.1} parent=1 // pred_check
      _
    $region7: #{tpu_custom_call.1} parent=1 // pred_check_branch
      %11 = sbr.rel (0) target = $region9
    $region8: #{tpu_custom_call.1} parent=1 // pred_region
      _
    $region9: #{tpu_custom_call.1} parent=1 // pred_fallthru
      _
    %p12 = scmp.eq.s32.totalorder 0, 0
    // Predicated region
    $region10: #{tpu_custom_call.1} parent=1 // pred_check
      %p13 = pneg %p12
    $region11: #{tpu_custom_call.1} parent=1 // pred_check_branch
      %15 = sbr.rel (%p13) target = $region13
    $region12: #{tpu_custom_call.1} parent=1 // pred_region
      %vm16 = vcmask 7168
      %17 = vst.msk [vmem:[#allocation2] sm:$0xff] %vm16, 0.0
      %18 = vst.msk [vmem:[#allocation2 + $0x8] sm:$0xff] %vm16, 0.0
      %19 = vst.msk [vmem:[#allocation2 + $0x10] sm:$0xff] %vm16, 0.0
      %20 = vst.msk [vmem:[#allocation2 + $0x18] sm:$0xff] %vm16, 0.0
      %21 = vst.msk [vmem:[#allocation2 + $0x20] sm:$0xff] %vm16, 0.0
      %22 = vst.msk [vmem:[#allocation2 + $0x28] sm:$0xff] %vm16, 0.0
      %23 = vst.msk [vmem:[#allocation2 + $0x30] sm:$0xff] %vm16, 0.0
      %24 = vst.msk [vmem:[#allocation2 + $0x38] sm:$0xff] %vm16, 0.0
    $region13: #{tpu_custom_call.1} parent=1 // pred_fallthru
      _
    %v25 = vld [vmem:[%s0] sm:$0xff]
    %v26 = vld [vmem:[%s0 + $0x8] sm:$0xff]
    %v27 = vld [vmem:[%s0 + $0x10] sm:$0xff]
    %v28 = vld [vmem:[%s0 + $0x18] sm:$0xff]
    %v29 = vld [vmem:[%s0 + $0x20] sm:$0xff]
    %v30 = vld [vmem:[%s0 + $0x28] sm:$0xff]
    %v31 = vld [vmem:[%s0 + $0x30] sm:$0xff]
    %v32 = vld [vmem:[%s0 + $0x38] sm:$0xff]
    %v33 = vld [vmem:[%s1] sm:$0xff]
    %v34 = vld [vmem:[%s1 + $0x8] sm:$0xff]
    %v35 = vld [vmem:[%s1 + $0x10] sm:$0xff]
    %v36 = vld [vmem:[%s1 + $0x18] sm:$0xff]
    %v37 = vld [vmem:[%s1 + $0x20] sm:$0xff]
    %v38 = vld [vmem:[%s1 + $0x28] sm:$0xff]
    %v39 = vld [vmem:[%s1 + $0x30] sm:$0xff]
    %v40 = vld [vmem:[%s1 + $0x38] sm:$0xff]
    %41 = vmax.xlane.f32.xlu0 %v25
    %v42 = vpop.xlane.xlu0 %41
    %43 = vmax.xlane.f32.xlu0 %v26
    %v44 = vpop.xlane.xlu0 %43
    %45 = vmax.xlane.f32.xlu0 %v27
    %v46 = vpop.xlane.xlu0 %45
    %47 = vmax.xlane.f32.xlu0 %v28
    %v48 = vpop.xlane.xlu0 %47
    %49 = vmax.xlane.f32.xlu0 %v29
    %v50 = vpop.xlane.xlu0 %49
    %51 = vmax.xlane.f32.xlu0 %v30
    %v52 = vpop.xlane.xlu0 %51
    %53 = vmax.xlane.f32.xlu0 %v31
    %v54 = vpop.xlane.xlu0 %53
    %55 = vmax.xlane.f32.xlu0 %v32
    %v56 = vpop.xlane.xlu0 %55
    %57 = vadd.xlane.f32.xlu0 %v25
    %v58 = vpop.xlane.xlu0 %57
    %59 = vadd.xlane.f32.xlu0 %v26
    %v60 = vpop.xlane.xlu0 %59
    %61 = vadd.xlane.f32.xlu0 %v27
    %v62 = vpop.xlane.xlu0 %61
    %63 = vadd.xlane.f32.xlu0 %v28
    %v64 = vpop.xlane.xlu0 %63
    %65 = vadd.xlane.f32.xlu0 %v29
    %v66 = vpop.xlane.xlu0 %65
    %67 = vadd.xlane.f32.xlu0 %v30
    %v68 = vpop.xlane.xlu0 %67
    %69 = vadd.xlane.f32.xlu0 %v31
    %v70 = vpop.xlane.xlu0 %69
    %71 = vadd.xlane.f32.xlu0 %v32
    %v72 = vpop.xlane.xlu0 %71
    %v73 = vlaneseq
    %v74 = vand.u32 %v73, 127
    %75 = vset.pattern.permute.xlu0 0
    %76 = vperm.xlu0 %75, %v33
    %v77 = vpop.permute.xlu0 %76
    %78 = vset.pattern.permute.xlu0 0
    %79 = vperm.xlu0 %78, %v34
    %v80 = vpop.permute.xlu0 %79
    %81 = vset.pattern.permute.xlu0 0
    %82 = vperm.xlu0 %81, %v35
    %v83 = vpop.permute.xlu0 %82
    %84 = vset.pattern.permute.xlu0 0
    %85 = vperm.xlu0 %84, %v36
    %v86 = vpop.permute.xlu0 %85
    %87 = vset.pattern.permute.xlu0 0
    %88 = vperm.xlu0 %87, %v37
    %v89 = vpop.permute.xlu0 %88
    %90 = vset.pattern.permute.xlu0 0
    %91 = vperm.xlu0 %90, %v38
    %v92 = vpop.permute.xlu0 %91
    %93 = vset.pattern.permute.xlu0 0
    %94 = vperm.xlu0 %93, %v39
    %v95 = vpop.permute.xlu0 %94
    %96 = vset.pattern.permute.xlu0 0
    %97 = vperm.xlu0 %96, %v40
    %v98 = vpop.permute.xlu0 %97
    %vm99 = vcmp.eq.s32.totalorder %v74, %v77
    %vm100 = vcmp.eq.s32.totalorder %v74, %v80
    %vm101 = vcmp.eq.s32.totalorder %v74, %v83
    %vm102 = vcmp.eq.s32.totalorder %v74, %v86
    %vm103 = vcmp.eq.s32.totalorder %v74, %v89
    %vm104 = vcmp.eq.s32.totalorder %v74, %v92
    %vm105 = vcmp.eq.s32.totalorder %v74, %v95
    %vm106 = vcmp.eq.s32.totalorder %v74, %v98
    %v107 = vsel %vm99, %v25, 0.0
    %v108 = vsel %vm100, %v26, 0.0
    %v109 = vsel %vm101, %v27, 0.0
    %v110 = vsel %vm102, %v28, 0.0
    %v111 = vsel %vm103, %v29, 0.0
    %v112 = vsel %vm104, %v30, 0.0
    %v113 = vsel %vm105, %v31, 0.0
    %v114 = vsel %vm106, %v32, 0.0
    %115 = vadd.xlane.f32.xlu0 %v107
    %v116 = vpop.xlane.xlu0 %115
    %117 = vadd.xlane.f32.xlu0 %v108
    %v118 = vpop.xlane.xlu0 %117
    %119 = vadd.xlane.f32.xlu0 %v109
    %v120 = vpop.xlane.xlu0 %119
    %121 = vadd.xlane.f32.xlu0 %v110
    %v122 = vpop.xlane.xlu0 %121
    %123 = vadd.xlane.f32.xlu0 %v111
    %v124 = vpop.xlane.xlu0 %123
    %125 = vadd.xlane.f32.xlu0 %v112
    %v126 = vpop.xlane.xlu0 %125
    %127 = vadd.xlane.f32.xlu0 %v113
    %v128 = vpop.xlane.xlu0 %127
    %129 = vadd.xlane.f32.xlu0 %v114
    %v130 = vpop.xlane.xlu0 %129
    %v131 = vsub.f32 %v25, %v42
    %v132 = vsub.f32 %v26, %v44
    %v133 = vsub.f32 %v27, %v46
    %v134 = vsub.f32 %v28, %v48
    %v135 = vsub.f32 %v29, %v50
    %v136 = vsub.f32 %v30, %v52
    %v137 = vsub.f32 %v31, %v54
    %v138 = vsub.f32 %v32, %v56
    %v139 = vmul.f32 %v131, 1.442695
    %v140 = vpow.pop %v139
    %v141 = vmul.f32 %v132, 1.442695
    %v142 = vpow.pop %v141
    %v143 = vmul.f32 %v133, 1.442695
    %v144 = vpow.pop %v143
    %v145 = vmul.f32 %v134, 1.442695
    %v146 = vpow.pop %v145
    %v147 = vmul.f32 %v135, 1.442695
    %v148 = vpow.pop %v147
    %v149 = vmul.f32 %v136, 1.442695
    %v150 = vpow.pop %v149
    %v151 = vmul.f32 %v137, 1.442695
    %v152 = vpow.pop %v151
    %v153 = vmul.f32 %v138, 1.442695
    %v154 = vpow.pop %v153
    %155 = vadd.xlane.f32.xlu0 %v140
    %v156 = vpop.xlane.xlu0 %155
    %157 = vadd.xlane.f32.xlu0 %v142
    %v158 = vpop.xlane.xlu0 %157
    %159 = vadd.xlane.f32.xlu0 %v144
    %v160 = vpop.xlane.xlu0 %159
    %161 = vadd.xlane.f32.xlu0 %v146
    %v162 = vpop.xlane.xlu0 %161
    %163 = vadd.xlane.f32.xlu0 %v148
    %v164 = vpop.xlane.xlu0 %163
    %165 = vadd.xlane.f32.xlu0 %v150
    %v166 = vpop.xlane.xlu0 %165
    %167 = vadd.xlane.f32.xlu0 %v152
    %v168 = vpop.xlane.xlu0 %167
    %169 = vadd.xlane.f32.xlu0 %v154
    %v170 = vpop.xlane.xlu0 %169
    %v171 = vlog2.pop %v156
    %v172 = vmul.f32 %v171, 0.6931472
    %v173 = vlog2.pop %v158
    %v174 = vmul.f32 %v173, 0.6931472
    %v175 = vlog2.pop %v160
    %v176 = vmul.f32 %v175, 0.6931472
    %v177 = vlog2.pop %v162
    %v178 = vmul.f32 %v177, 0.6931472
    %v179 = vlog2.pop %v164
    %v180 = vmul.f32 %v179, 0.6931472
    %v181 = vlog2.pop %v166
    %v182 = vmul.f32 %v181, 0.6931472
    %v183 = vlog2.pop %v168
    %v184 = vmul.f32 %v183, 0.6931472
    %v185 = vlog2.pop %v170
    %v186 = vmul.f32 %v185, 0.6931472
    %v187 = vmul.f32 %v42, 128.0
    %v188 = vmul.f32 %v44, 128.0
    %v189 = vmul.f32 %v46, 128.0
    %v190 = vmul.f32 %v48, 128.0
    %v191 = vmul.f32 %v50, 128.0
    %v192 = vmul.f32 %v52, 128.0
    %v193 = vmul.f32 %v54, 128.0
    %v194 = vmul.f32 %v56, 128.0
    %v195 = vsub.f32 %v58, %v187
    %v196 = vsub.f32 %v60, %v188
    %v197 = vsub.f32 %v62, %v189
    %v198 = vsub.f32 %v64, %v190
    %v199 = vsub.f32 %v66, %v191
    %v200 = vsub.f32 %v68, %v192
    %v201 = vsub.f32 %v70, %v193
    %v202 = vsub.f32 %v72, %v194
    %v203 = vsub.f32 %v116, %v42
    %v204 = vsub.f32 %v118, %v44
    %v205 = vsub.f32 %v120, %v46
    %v206 = vsub.f32 %v122, %v48
    %v207 = vsub.f32 %v124, %v50
    %v208 = vsub.f32 %v126, %v52
    %v209 = vsub.f32 %v128, %v54
    %v210 = vsub.f32 %v130, %v56
    %v211 = vmul.f32 %v172, 128.0
    %v212 = vmul.f32 %v174, 128.0
    %v213 = vmul.f32 %v176, 128.0
    %v214 = vmul.f32 %v178, 128.0
    %v215 = vmul.f32 %v180, 128.0
    %v216 = vmul.f32 %v182, 128.0
    %v217 = vmul.f32 %v184, 128.0
    %v218 = vmul.f32 %v186, 128.0
    %v219 = vsub.f32 %v195, %v211
    %v220 = vsub.f32 %v196, %v212
    %v221 = vsub.f32 %v197, %v213
    %v222 = vsub.f32 %v198, %v214
    %v223 = vsub.f32 %v199, %v215
    %v224 = vsub.f32 %v200, %v216
    %v225 = vsub.f32 %v201, %v217
    %v226 = vsub.f32 %v202, %v218
    %v227 = vmul.f32 %v219, 0.0007874016
    %v228 = vmul.f32 %v220, 0.0007874016
    %v229 = vmul.f32 %v221, 0.0007874016
    %v230 = vmul.f32 %v222, 0.0007874016
    %v231 = vmul.f32 %v223, 0.0007874016
    %v232 = vmul.f32 %v224, 0.0007874016
    %v233 = vmul.f32 %v225, 0.0007874016
    %v234 = vmul.f32 %v226, 0.0007874016
    %v235 = vsub.f32 %v203, %v172
    %v236 = vsub.f32 %v204, %v174
    %v237 = vsub.f32 %v205, %v176
    %v238 = vsub.f32 %v206, %v178
    %v239 = vsub.f32 %v207, %v180
    %v240 = vsub.f32 %v208, %v182
    %v241 = vsub.f32 %v209, %v184
    %v242 = vsub.f32 %v210, %v186
    %v243 = vmul.f32 %v235, 0.8992126
    %v244 = vmul.f32 %v236, 0.8992126
    %v245 = vmul.f32 %v237, 0.8992126
    %v246 = vmul.f32 %v238, 0.8992126
    %v247 = vmul.f32 %v239, 0.8992126
    %v248 = vmul.f32 %v240, 0.8992126
    %v249 = vmul.f32 %v241, 0.8992126
    %v250 = vmul.f32 %v242, 0.8992126
    %v251 = vadd.f32 %v227, %v243
    %v252 = vadd.f32 %v228, %v244
    %v253 = vadd.f32 %v229, %v245
    %v254 = vadd.f32 %v230, %v246
    %v255 = vadd.f32 %v231, %v247
    %v256 = vadd.f32 %v232, %v248
    %v257 = vadd.f32 %v233, %v249
    %v258 = vadd.f32 %v234, %v250
    %v259 = vsub.f32 0.0, %v251
    %v260 = vsub.f32 0.0, %v252
    %v261 = vsub.f32 0.0, %v253
    %v262 = vsub.f32 0.0, %v254
    %v263 = vsub.f32 0.0, %v255
    %v264 = vsub.f32 0.0, %v256
    %v265 = vsub.f32 0.0, %v257
    %v266 = vsub.f32 0.0, %v258
    %v267 = vld [vmem:[#allocation2] sm:$0xff]
    %v268 = vld [vmem:[#allocation2 + $0x8] sm:$0xff]
    %v269 = vld [vmem:[#allocation2 + $0x10] sm:$0xff]
    %v270 = vld [vmem:[#allocation2 + $0x18] sm:$0xff]
    %v271 = vld [vmem:[#allocation2 + $0x20] sm:$0xff]
    %v272 = vld [vmem:[#allocation2 + $0x28] sm:$0xff]
    %v273 = vld [vmem:[#allocation2 + $0x30] sm:$0xff]
    %v274 = vld [vmem:[#allocation2 + $0x38] sm:$0xff]
    %v275 = vadd.f32 %v267, %v259
    %v276 = vadd.f32 %v268, %v260
    %v277 = vadd.f32 %v269, %v261
    %v278 = vadd.f32 %v270, %v262
    %v279 = vadd.f32 %v271, %v263
    %v280 = vadd.f32 %v272, %v264
    %v281 = vadd.f32 %v273, %v265
    %v282 = vadd.f32 %v274, %v266
    %vm283 = vcmask 7168
    %284 = vst.msk [vmem:[#allocation2] sm:$0xff] %vm283, %v275
    %285 = vst.msk [vmem:[#allocation2 + $0x8] sm:$0xff] %vm283, %v276
    %286 = vst.msk [vmem:[#allocation2 + $0x10] sm:$0xff] %vm283, %v277
    %287 = vst.msk [vmem:[#allocation2 + $0x18] sm:$0xff] %vm283, %v278
    %288 = vst.msk [vmem:[#allocation2 + $0x20] sm:$0xff] %vm283, %v279
    %289 = vst.msk [vmem:[#allocation2 + $0x28] sm:$0xff] %vm283, %v280
    %290 = vst.msk [vmem:[#allocation2 + $0x30] sm:$0xff] %vm283, %v281
    %291 = vst.msk [vmem:[#allocation2 + $0x38] sm:$0xff] %vm283, %v282
    // Predicated region
    $region14: #{tpu_custom_call.1} parent=1 // pred_check
      %p292 = pneg %p12
    $region15: #{tpu_custom_call.1} parent=1 // pred_check_branch
      %294 = sbr.rel (%p292) target = $region17
    $region16: #{tpu_custom_call.1} parent=1 // pred_region
      %v295 = vld [vmem:[#allocation2] sm:$0xff]
      %v296 = vld [vmem:[#allocation2 + $0x8] sm:$0xff]
      %v297 = vld [vmem:[#allocation2 + $0x10] sm:$0xff]
      %v298 = vld [vmem:[#allocation2 + $0x18] sm:$0xff]
      %v299 = vld [vmem:[#allocation2 + $0x20] sm:$0xff]
      %v300 = vld [vmem:[#allocation2 + $0x28] sm:$0xff]
      %v301 = vld [vmem:[#allocation2 + $0x30] sm:$0xff]
      %v302 = vld [vmem:[#allocation2 + $0x38] sm:$0xff]
      %v303 = vsel %vm283, %v295, 0.0
      %v304 = vsel %vm283, %v296, 0.0
      %v305 = vadd.f32 %v303, %v304
      %v306 = vsel %vm283, %v297, 0.0
      %v307 = vadd.f32 %v305, %v306
      %v308 = vsel %vm283, %v298, 0.0
      %v309 = vadd.f32 %v307, %v308
      %v310 = vsel %vm283, %v299, 0.0
      %v311 = vadd.f32 %v309, %v310
      %v312 = vsel %vm283, %v300, 0.0
      %v313 = vadd.f32 %v311, %v312
      %v314 = vsel %vm283, %v301, 0.0
      %v315 = vadd.f32 %v313, %v314
      %v316 = vsel %vm283, %v302, 0.0
      %v317 = vadd.f32 %v315, %v316
      %318 = vadd.xlane.f32.xlu0 %v317
      %v319 = vpop.xlane.xlu0 %318
      %v320 = vrot.slane %v319, 4
      %v321 = vadd.f32 %v319, %v320
      %v322 = vrot.slane %v321, 2
      %v323 = vadd.f32 %v321, %v322
      %v324 = vrot.slane %v323, 1
      %v325 = vadd.f32 %v323, %v324
      %s326 = vtos %v325
      %s327 = scalar_lea.smem [#allocation3], 0
      %328 = sst [smem:[%s327]] %s326
    $region17: #{tpu_custom_call.1} parent=1 // pred_fallthru
      _
    // Predicated region
    $region18: #{tpu_custom_call.1} parent=1 // pred_check
      _
    $region19: #{tpu_custom_call.1} parent=1 // pred_check_branch
      %330 = sbr.rel (0) target = $region21
    $region20: #{tpu_custom_call.1} parent=1 // pred_region
      %s332 = ssub.s32 16, 16
      %333 = vsyncadd [#allocation4], %s332
      %336 = dma.smem_to_hbm [#allocation3], 16, %s2, [#allocation4]
    $region21: #{tpu_custom_call.1} parent=1 // pred_fallthru
      _
    // Predicated region
    $region22: #{tpu_custom_call.1} parent=1 // pred_check
      _
    $region23: #{tpu_custom_call.1} parent=1 // pred_check_branch
      %338 = sbr.rel (0) target = $region25
    $region24: #{tpu_custom_call.1} parent=1 // pred_region
      %339 = dma.done [#allocation4], 16
    $region25: #{tpu_custom_call.1} parent=1 // pred_fallthru
      _
    %340 = sfence
    %341 = vsyncpa [#allocation4], 1

</llo_original>
